<compile_context>
chip_gen: v5e
topology: v5e:2x2
jax: 0.10.0
libtpu: 0.0.40
codegen_flags: <defaults>
</compile_context>

<pallas_src>
import jax
import jax.numpy as jnp
from jax.experimental import pallas as pl
from jax.experimental.pallas import tpu as pltpu


def _linear_layer_kernel(x_ref, w_ref, b_ref, o_ref):
    """One grid step == one Linear layer.

    x_ref: (Bp, Fp) f32   padded input activations (resident; read at step 0)
    w_ref: (Fp, Fp)       this layer's pre-transposed weights, layout (in, out)
    b_ref: (1, Fp)  f32   this layer's padded bias
    o_ref: (Bp, Fp) f32   resident output block; carries the activation across
                          the layer grid axis (accumulator pattern).
    """
    @pl.when(pl.program_id(0) == 0)
    def _():
        o_ref[...] = x_ref[...]

    act = o_ref[...]
    # Weight-streaming at reduced precision: feed the MXU matching low-precision
    # operands (cast only the tiny (Bp, Fp) activation tile, never the weight
    # tile) and accumulate in f32.  The f32 path stays exact.
    if w_ref.dtype != jnp.float32:
        act = act.astype(w_ref.dtype)

    o_ref[...] = (
        jnp.dot(act, w_ref[...], preferred_element_type=jnp.float32) + b_ref[...]
    )


def prepare_params(weights, biases, *, weight_dtype=jnp.float32):
    """One-time parameter prep (do NOT call per forward).

    weights: (L, F, F) in PyTorch nn.Linear layout (out_features, in_features)
    biases:  (L, F)
    Returns padded, pre-transposed (in, out) weight stack and (L, 1, Fp) biases.
    Zero padding is exact for a Linear chain: padded weight rows/cols and bias
    entries are zero, so padded activation columns stay identically zero.
    """
    L, F, _ = weights.shape
    Fp = pl.cdiv(F, 128) * 128
    w_t = jnp.swapaxes(weights, 1, 2).astype(weight_dtype)          # (L, in, out)
    w_p = jnp.pad(w_t, ((0, 0), (0, Fp - F), (0, Fp - F)))          # (L, Fp, Fp)
    b_p = jnp.pad(biases.astype(jnp.float32), ((0, 0), (0, Fp - F)))
    b_p = b_p.reshape(L, 1, Fp)                                     # (L, 1, Fp)
    return w_p, b_p


def my_model_forward(x, w_p, b_p):
    """x: (B, F) f32; w_p: (L, Fp, Fp) prepared weights; b_p: (L, 1, Fp) f32."""
    B, F = x.shape
    L, _, Fp = b_p.shape
    Bp = pl.cdiv(B, 8) * 8

    x_p = jnp.pad(x.astype(jnp.float32), ((0, Bp - B), (0, Fp - F)))

    # Explicit VMEM budget: double-buffered weight tile + bias + resident x/out.
    w_bytes = 2 * Fp * Fp * jnp.dtype(w_p.dtype).itemsize
    misc_bytes = 2 * Fp * 4 + 2 * Bp * Fp * 4 + 2 * Bp * Fp * 4
    vmem_limit = int(min(max(2 * (w_bytes + misc_bytes) + (2 << 20), 16 << 20),
                         64 << 20))

    out_p = pl.pallas_call(
        _linear_layer_kernel,
        out_shape=jax.ShapeDtypeStruct((Bp, Fp), jnp.float32),
        grid_spec=pltpu.PrefetchScalarGridSpec(
            num_scalar_prefetch=0,
            grid=(L,),  # one grid step per layer; weight DMA overlaps compute
            in_specs=[
                pl.BlockSpec((Bp, Fp), lambda l: (0, 0)),        # x (resident)
                pl.BlockSpec((None, Fp, Fp), lambda l: (l, 0, 0)),  # layer weights
                pl.BlockSpec((None, 1, Fp), lambda l: (l, 0, 0)),   # layer bias
            ],
            # Same block for every l -> output stays VMEM-resident (activation carry).
            out_specs=pl.BlockSpec((Bp, Fp), lambda l: (0, 0)),
        ),
        compiler_params=pltpu.CompilerParams(
            dimension_semantics=("arbitrary",),   # sequential carry over layers
            vmem_limit_bytes=vmem_limit,
        ),
    )(x_p, w_p, b_p)

    return out_p[:B, :F].astype(x.dtype)


def init_params(key, n_features, n_layers):
    """Deterministic init mimicking nn.Linear default: U(-1/sqrt(F), 1/sqrt(F))."""
    bound = 1.0 / jnp.sqrt(jnp.float32(n_features))
    kw, kb = jax.random.split(key)
    weights = jax.random.uniform(
        kw, (n_layers, n_features, n_features), jnp.float32, -bound, bound)
    biases = jax.random.uniform(
        kb, (n_layers, n_features), jnp.float32, -bound, bound)
    return weights, biases


def reference_forward(x, weights, biases):
    out = x
    for l in range(weights.shape[0]):
        out = out @ weights[l].T + biases[l]
    return out


def reference_forward_lowp(x, weights, biases, dtype):
    """Reference matching the low-precision streaming path: per layer, cast the
    activation and weight to `dtype`, matmul with f32 accumulation, f32 bias."""
    out = x
    for l in range(weights.shape[0]):
        a = out.astype(dtype)
        w = weights[l].T.astype(dtype)
        out = jnp.dot(a, w, preferred_element_type=jnp.float32) + biases[l]
    return out


if __name__ == "__main__":
    B = 8           # batch
    F = 32          # n_features
    L = 3           # n_layers

    key = jax.random.PRNGKey(0)
    kx, kp = jax.random.split(key)
    x = jax.random.normal(kx, (B, F), dtype=jnp.float32)
    weights, biases = init_params(kp, F, L)

    # --- f32 path: exact semantics of the PyTorch module ------------------
    w_p, b_p = prepare_params(weights, biases)          # once, not per call
    out = jax.block_until_ready(my_model_forward(x, w_p, b_p))
    ref = reference_forward(x, weights, biases)
    assert out.shape == (B, F)
    assert jnp.allclose(out, ref, atol=1e-4, rtol=1e-4), "f32 mismatch vs reference"

    # --- bf16 weight-streaming path (HBM-bandwidth optimization) ----------
    w_p16, b_p16 = prepare_params(weights, biases, weight_dtype=jnp.bfloat16)
    out16 = jax.block_until_ready(my_model_forward(x, w_p16, b_p16))
    ref16 = reference_forward_lowp(x, weights, biases, jnp.bfloat16)
    assert jnp.allclose(out16, ref16, atol=5e-2, rtol=5e-2), \
        "bf16-weight mismatch vs low-precision reference"

    print("KERNEL_OK")
</pallas_src>

<mosaic_0001>
module attributes {stable_mosaic.version = 11 : i64} {
  func.func @_linear_layer_kernel(%arg0: i32, %arg1: memref<8x128xf32, #tpu.memory_space<vmem>>, %arg2: memref<1x128x128xf32, #tpu.memory_space<vmem>>, %arg3: memref<1x1x128xf32, #tpu.memory_space<vmem>>, %arg4: memref<8x128xf32, #tpu.memory_space<vmem>>) attributes {dimension_semantics = [#tpu.dimension_semantics<arbitrary>], iteration_bounds = array<i64: 3>, scalar_prefetch = 0 : i64, scratch_operands = 0 : i64, tpu.core_type = #tpu.core_type<tc>, window_params = [{pipeline_mode = #tpu.pipeline_mode<synchronous>, transform_indices = @transform_0, window_bounds = array<i64: 8, 128>}, {transform_indices = @transform_1, window_bounds = array<i64: 1, 128, 128>}, {transform_indices = @transform_2, window_bounds = array<i64: 1, 1, 128>}, {pipeline_mode = #tpu.pipeline_mode<synchronous>, transform_indices = @transform_3, window_bounds = array<i64: 8, 128>}]} {
    %c0_i32 = arith.constant 0 : i32
    %0 = arith.cmpi eq, %arg0, %c0_i32 : i32
    %1 = arith.extui %0 : i1 to i32
    %c0_i32_0 = arith.constant 0 : i32
    %2 = arith.cmpi ne, %1, %c0_i32_0 : i32
    scf.if %2 {
      %c0_10 = arith.constant 0 : index
      %c0_11 = arith.constant 0 : index
      %12 = vector.load %arg1[%c0_10, %c0_11] : memref<8x128xf32, #tpu.memory_space<vmem>>, vector<8x128xf32>
      %c0_12 = arith.constant 0 : index
      %c0_13 = arith.constant 0 : index
      %13 = vector.load %arg4[%c0_12, %c0_13] : memref<8x128xf32, #tpu.memory_space<vmem>>, vector<8x128xf32>
      tpu.vector_store %arg4[%c0_12, %c0_13], %12 {strides = array<i32>} : memref<8x128xf32, #tpu.memory_space<vmem>>, vector<8x128xf32>,
    } else {
    }
    %c0 = arith.constant 0 : index
    %c0_1 = arith.constant 0 : index
    %3 = vector.load %arg4[%c0, %c0_1] : memref<8x128xf32, #tpu.memory_space<vmem>>, vector<8x128xf32>
    %c0_2 = arith.constant 0 : index
    %c0_3 = arith.constant 0 : index
    %c0_4 = arith.constant 0 : index
    %4 = vector.load %arg2[%c0_2, %c0_3, %c0_4] : memref<1x128x128xf32, #tpu.memory_space<vmem>>, vector<1x128x128xf32>
    %5 = vector.shape_cast %4 : vector<1x128x128xf32> to vector<128x128xf32>
    %cst = arith.constant dense<0.000000e+00> : vector<8x128xf32>
    %6 = tpu.matmul %3, %5, %cst {dimension_numbers = #tpu.dot_dimension_numbers<[1], [0], [0], [1], [0, 0, 1, 1], [], []>} : vector<8x128xf32>, vector<128x128xf32>, vector<8x128xf32> -> vector<8x128xf32>
    %c0_5 = arith.constant 0 : index
    %c0_6 = arith.constant 0 : index
    %c0_7 = arith.constant 0 : index
    %7 = vector.load %arg3[%c0_5, %c0_6, %c0_7] : memref<1x1x128xf32, #tpu.memory_space<vmem>>, vector<1x1x128xf32>
    %8 = vector.shape_cast %7 : vector<1x1x128xf32> to vector<1x128xf32>
    %9 = vector.broadcast %8 : vector<1x128xf32> to vector<8x128xf32>
    %10 = arith.addf %6, %9 : vector<8x128xf32>
    %c0_8 = arith.constant 0 : index
    %c0_9 = arith.constant 0 : index
    %11 = vector.load %arg4[%c0_8, %c0_9] : memref<8x128xf32, #tpu.memory_space<vmem>>, vector<8x128xf32>
    tpu.vector_store %arg4[%c0_8, %c0_9], %10 {strides = array<i32>} : memref<8x128xf32, #tpu.memory_space<vmem>>, vector<8x128xf32>,
    return
  }
  func.func @transform_0(%arg0: i32) -> (i32, i32) {
    %c0_i32 = arith.constant 0 : i32
    %c0_i32_0 = arith.constant 0 : i32
    %c0_i32_1 = arith.constant 0 : i32
    return %c0_i32, %c0_i32_0 : i32, i32
  }
  func.func @transform_1(%arg0: i32) -> (i32, i32, i32) {
    %c0_i32 = arith.constant 0 : i32
    %c0_i32_0 = arith.constant 0 : i32
    %c0_i32_1 = arith.constant 0 : i32
    return %arg0, %c0_i32, %c0_i32_0 : i32, i32, i32
  }
  func.func @transform_2(%arg0: i32) -> (i32, i32, i32) {
    %c0_i32 = arith.constant 0 : i32
    %c0_i32_0 = arith.constant 0 : i32
    %c0_i32_1 = arith.constant 0 : i32
    return %arg0, %c0_i32, %c0_i32_0 : i32, i32, i32
  }
  func.func @transform_3(%arg0: i32) -> (i32, i32) {
    %c0_i32 = arith.constant 0 : i32
    %c0_i32_0 = arith.constant 0 : i32
    %c0_i32_1 = arith.constant 0 : i32
    return %c0_i32, %c0_i32_0 : i32, i32
  }
}

</mosaic_0001>

<llo_original>
// kernel: tpu_custom_call.1
$region0: #{tpu_custom_call.1}
  #allocation0 [shape = 'u32[]', space=smem, size = 0x4, offset = 0x4, fixed_abs, tag = 'smem constant byte address 0x4 - core index']
  #allocation1 [shape = 'u32[72,128]{1,0:T(1,128)}', space=vmem, size = 0x9000, scoped, tag = 'internal scratch']
  %s0 = inlined_call_operand.hbm [shape: f32[8,128], index: 0, kind: input, shape index: {}]
  %s1 = inlined_call_operand.hbm [shape: f32[3,128,128], index: 1, kind: input, shape index: {}]
  %s2 = inlined_call_operand.hbm [shape: f32[3,1,128], index: 2, kind: input, shape index: {}]
  %s3 = inlined_call_operand.hbm [shape: f32[8,128], index: 3, kind: output, shape index: {}]
  %s4 = sld [smem:[#allocation0]]
  $region61: #{tpu_custom_call.1} parent=0
    _
  %s6 = ssub.s32 1, %s4
  %s7 = scalar_select 0, %s6, %s4
  $region1: #{tpu_custom_call.1} parent=0
    #allocation2 [shape = 'u8[4096]{0}', space=vmem, size = 0x1000, scoped, tag = 'input window, operand 0, single buffered']
    #allocation3 [shape = 's32[2]{0}', space=sflag, size = 0x8, scoped, tag = 'scoped memory for tpu_custom_call.1']
    #allocation4 [shape = 's32[2]{0}', space=sflag, size = 0x8, scoped, tag = 'scoped memory for tpu_custom_call.1']
    #allocation5 [shape = 'u8[131072]{0}', space=vmem, size = 0x20000, scoped, tag = 'input window, operand 1']
    #allocation6 [shape = 's32[2]{0}', space=sflag, size = 0x8, scoped, tag = 'scoped memory for tpu_custom_call.1']
    #allocation7 [shape = 'u8[1024]{0}', space=vmem, size = 0x400, scoped, tag = 'input window, operand 2']
    #allocation8 [shape = 'u8[4096]{0}', space=vmem, size = 0x1000, scoped, tag = 'output window, operand 0, single buffered']
    %8 = vsyncpa [#allocation3], 0
    %9 = vsyncpa [#allocation6], 0
    %s10 = scalar_lea.sflag [#allocation6], 1
    %11 = vsyncpa %s10, 0
    %12 = vsyncpa [#allocation4], 0
    loop: start=0, step=1, limit=5
    $region2: #{tpu_custom_call.1} parent=1 // loop_pre_header
      _
    $region3: #{tpu_custom_call.1} parent=1 // loop_header
      %s14 = sphi 0, %s18
      %p15 = scmp.ge.s32.totalorder %s14, 5
      %s22 = sphi 0, %s22
      %s24 = sphi 0, %s22
      %s25 = sphi 0, %s24
      %s39 = sphi 0, %s25
      %s45 = sphi 0, %s47
      %s48 = sphi 0, %s45
      %s49 = sphi 0, %s48
      %s65 = sphi 0, %s49
      %s71 = sphi 0, %s73
      %s74 = sphi 0, %s71
      %s75 = sphi 0, %s74
      %s91 = sphi 0, %s75
      %s95 = sphi 0, %s95
      %s97 = sphi 0, %s95
      %s98 = sphi 0, %s97
      %s112 = sphi 0, %s98
    $region4: #{tpu_custom_call.1} parent=1 // loop_header_branch
      %17 = sbr.rel (%p15) target = $region8
    $region5: #{tpu_custom_call.1} parent=1 // loop_body
      %s19 = ssub.s32 %s14, 1
      %s20 = ssub.s32 %s14, 2
      %s21 = sadd.s32 %s14, 1
      %s23 = sadd.s32 %s22, 1
      %p26 = scmp.eq.s32.totalorder %s14, 2
      %p27 = scmp.ne.s32.totalorder %s22, %s24
      %p28 = scmp.eq.s32.totalorder %s14, 0
      %p29 = por %p27, %p28
      %p30 = scmp.ne.s32.totalorder %s22, %s24
      %p31 = scmp.eq.s32.totalorder %s19, 2
      %p32 = por %p30, %p31
      %p33 = scmp.ne.s32.totalorder %s24, %s25
      %p34 = scmp.eq.s32.totalorder %s19, 0
      %p35 = por %p33, %p34
      %p36 = scmp.ne.s32.totalorder %s24, %s25
      %p37 = scmp.eq.s32.totalorder %s20, 2
      %p38 = por %p36, %p37
      %p40 = scmp.ne.s32.totalorder %s25, %s39
      %p41 = scmp.eq.s32.totalorder %s20, 0
      %p42 = por %p40, %p41
      %s43 = ssub.s32 %s14, %s21
      %p44 = scmp.eq.s32.totalorder %s43, 0
      %s46 = sadd.s32 %s45, 1
      %s47 = scalar_select %p44, %s45, %s46
      %p50 = pneg %p44
      %p51 = scmp.eq.s32.totalorder %s14, 2
      %p52 = por %p50, %p51
      %p53 = scmp.ne.s32.totalorder %s45, %s48
      %p54 = scmp.eq.s32.totalorder %s14, 0
      %p55 = por %p53, %p54
      %p56 = scmp.ne.s32.totalorder %s45, %s48
      %p57 = scmp.eq.s32.totalorder %s19, 2
      %p58 = por %p56, %p57
      %p59 = scmp.ne.s32.totalorder %s48, %s49
      %p60 = scmp.eq.s32.totalorder %s19, 0
      %p61 = por %p59, %p60
      %p62 = scmp.ne.s32.totalorder %s48, %s49
      %p63 = scmp.eq.s32.totalorder %s20, 2
      %p64 = por %p62, %p63
      %p66 = scmp.ne.s32.totalorder %s49, %s65
      %p67 = scmp.eq.s32.totalorder %s20, 0
      %p68 = por %p66, %p67
      %s69 = ssub.s32 %s14, %s21
      %p70 = scmp.eq.s32.totalorder %s69, 0
      %s72 = sadd.s32 %s71, 1
      %s73 = scalar_select %p70, %s71, %s72
      %p76 = pneg %p70
      %p77 = scmp.eq.s32.totalorder %s14, 2
      %p78 = por %p76, %p77
      %p79 = scmp.ne.s32.totalorder %s71, %s74
      %p80 = scmp.eq.s32.totalorder %s14, 0
      %p81 = por %p79, %p80
      %p82 = scmp.ne.s32.totalorder %s71, %s74
      %p83 = scmp.eq.s32.totalorder %s19, 2
      %p84 = por %p82, %p83
      %p85 = scmp.ne.s32.totalorder %s74, %s75
      %p86 = scmp.eq.s32.totalorder %s19, 0
      %p87 = por %p85, %p86
      %p88 = scmp.ne.s32.totalorder %s74, %s75
      %p89 = scmp.eq.s32.totalorder %s20, 2
      %p90 = por %p88, %p89
      %p92 = scmp.ne.s32.totalorder %s75, %s91
      %p93 = scmp.eq.s32.totalorder %s20, 0
      %p94 = por %p92, %p93
      %s96 = sadd.s32 %s95, 1
      %p99 = scmp.eq.s32.totalorder %s14, 2
      %p100 = scmp.ne.s32.totalorder %s95, %s97
      %p101 = scmp.eq.s32.totalorder %s14, 0
      %p102 = por %p100, %p101
      %p103 = scmp.ne.s32.totalorder %s95, %s97
      %p104 = scmp.eq.s32.totalorder %s19, 2
      %p105 = por %p103, %p104
      %p106 = scmp.ne.s32.totalorder %s97, %s98
      %p107 = scmp.eq.s32.totalorder %s19, 0
      %p108 = por %p106, %p107
      %p109 = scmp.ne.s32.totalorder %s97, %s98
      %p110 = scmp.eq.s32.totalorder %s20, 2
      %p111 = por %p109, %p110
      %p113 = scmp.ne.s32.totalorder %s98, %s112
      %p114 = scmp.eq.s32.totalorder %s20, 0
      %p115 = por %p113, %p114
      %p116 = scmp.le.s32.totalorder 1, %s14
      %p117 = scmp.lt.s32.totalorder %s14, 4
      %p118 = pnand %p116, %p117
      %p119 = pneg %p118
      // Predicated region
      $region9: #{tpu_custom_call.1} parent=5 // pred_check
        _
      $region10: #{tpu_custom_call.1} parent=5 // pred_check_branch
        %121 = sbr.rel (%p118) target = $region12
      $region11: #{tpu_custom_call.1} parent=5 // pred_region
        %s122 = ssub.s32 %s14, 1
        // Predicated region
        $region13: #{tpu_custom_call.1} parent=11 // pred_check
          %p123 = pneg %p35
        $region14: #{tpu_custom_call.1} parent=11 // pred_check_branch
          %125 = sbr.rel (%p123) target = $region16
        $region15: #{tpu_custom_call.1} parent=11 // pred_region
          %127 = vsyncadd [#allocation3], 0
          %s129 = sshll.u32 %s0, 4
          %s130 = int_to_ptr.hbm [resolvable:$true] %s129
          %s131 = sshll.u32 [#allocation2], 4
          %s132 = int_to_ptr.vmem [resolvable:$true] %s131
          %134 = dma.hbm_to_vmem [thread:$0]  %s130, 128, %s132, [#allocation3]
        $region16: #{tpu_custom_call.1} parent=11 // pred_fallthru
          _
      $region12: #{tpu_custom_call.1} parent=5 // pred_fallthru
        _
      %p135 = scmp.lt.s32.totalorder %s14, 3
      // Predicated region
      $region17: #{tpu_custom_call.1} parent=5 // pred_check
        %p136 = pneg %p135
      $region18: #{tpu_custom_call.1} parent=5 // pred_check_branch
        %138 = sbr.rel (%p136) target = $region20
      $region19: #{tpu_custom_call.1} parent=5 // pred_region
        // Predicated region
        $region21: #{tpu_custom_call.1} parent=19 // pred_check
          %p139 = pneg %p55
        $region22: #{tpu_custom_call.1} parent=19 // pred_check_branch
          %141 = sbr.rel (%p139) target = $region24
        $region23: #{tpu_custom_call.1} parent=19 // pred_region
          %s142 = sand.u32 %s14, 1
          %s143 = scalar_lea.sflag [#allocation6], %s142
          %s144 = sand.u32 %s45, 1
          %s145 = smul.addr %s144, 128
          %s146 = scalar_lea.vmem [#allocation5], %s145
          %148 = vsyncadd %s143, 0
          %s149 = smul.addr %s14, 16
          %s150 = smul.addr %s149, 8
          %s151 = scalar_lea.hbm %s1, %s150
          %s152 = sshll.u32 %s151, 4
          %s153 = int_to_ptr.hbm [resolvable:$true] %s152
          %s154 = sshll.u32 %s146, 4
          %s155 = int_to_ptr.vmem [resolvable:$true] %s154
          %160 = dma.hbm_to_vmem [thread:$0]  %s153, 2048, %s155, %s143, 128, 128, 8
        $region24: #{tpu_custom_call.1} parent=19 // pred_fallthru
          _
        // Predicated region
        $region25: #{tpu_custom_call.1} parent=19 // pred_check
          %p161 = pneg %p81
        $region26: #{tpu_custom_call.1} parent=19 // pred_check_branch
          %163 = sbr.rel (%p161) target = $region28
        $region27: #{tpu_custom_call.1} parent=19 // pred_region
          %s164 = sand.u32 %s14, 1
          %s165 = scalar_lea.sflag [#allocation6], %s164
          %s166 = sand.u32 %s71, 1
          %s167 = scalar_lea.vmem [#allocation7], %s166
          %169 = vsyncadd %s165, 0
          %s170 = scalar_lea.hbm %s2, %s14
          %s172 = sshll.u32 %s170, 4
          %s173 = int_to_ptr.hbm [resolvable:$true] %s172
          %s174 = sshll.u32 %s167, 4
          %s175 = int_to_ptr.vmem [resolvable:$true] %s174
          %177 = dma.hbm_to_vmem [thread:$0]  %s173, 16, %s175, %s165
        $region28: #{tpu_custom_call.1} parent=19 // pred_fallthru
          _
      $region20: #{tpu_custom_call.1} parent=5 // pred_fallthru
        _
      %p178 = scmp.le.s32.totalorder 1, %s14
      %p179 = scmp.lt.s32.totalorder %s14, 4
      %p180 = pnand %p178, %p179
      %p181 = pneg %p180
      // Predicated region
      $region29: #{tpu_custom_call.1} parent=5 // pred_check
        _
      $region30: #{tpu_custom_call.1} parent=5 // pred_check_branch
        %183 = sbr.rel (%p180) target = $region32
      $region31: #{tpu_custom_call.1} parent=5 // pred_region
        %s184 = ssub.s32 %s14, 1
        // Predicated region
        $region33: #{tpu_custom_call.1} parent=31 // pred_check
          %p185 = pneg %p35
        $region34: #{tpu_custom_call.1} parent=31 // pred_check_branch
          %187 = sbr.rel (%p185) target = $region36
        $region35: #{tpu_custom_call.1} parent=31 // pred_region
          %189 = dma.done [#allocation3], 128
        $region36: #{tpu_custom_call.1} parent=31 // pred_fallthru
          _
        %s190 = sand.u32 %s19, 1
        %s191 = scalar_lea.sflag [#allocation6], %s190
        %s192 = sand.u32 %s48, 1
        %s193 = smul.addr %s192, 128
        %s194 = scalar_lea.vmem [#allocation5], %s193
        // Predicated region
        $region37: #{tpu_custom_call.1} parent=31 // pred_check
          %p195 = pneg %p61
        $region38: #{tpu_custom_call.1} parent=31 // pred_check_branch
          %197 = sbr.rel (%p195) target = $region40
        $region39: #{tpu_custom_call.1} parent=31 // pred_region
          %199 = dma.done %s191, 2048
        $region40: #{tpu_custom_call.1} parent=31 // pred_fallthru
          _
        %s200 = sand.u32 %s19, 1
        %s201 = scalar_lea.sflag [#allocation6], %s200
        %s202 = sand.u32 %s74, 1
        %s203 = scalar_lea.vmem [#allocation7], %s202
        // Predicated region
        $region41: #{tpu_custom_call.1} parent=31 // pred_check
          %p204 = pneg %p87
        $region42: #{tpu_custom_call.1} parent=31 // pred_check_branch
          %206 = sbr.rel (%p204) target = $region44
        $region43: #{tpu_custom_call.1} parent=31 // pred_region
          %208 = dma.done %s201, 16
        $region44: #{tpu_custom_call.1} parent=31 // pred_fallthru
          _
        %p209 = pneg %p35
        %p210 = pneg %p32
        %s211 = sand.u32 %s19, 1
        %s212 = scalar_lea.sflag [#allocation6], %s211
        %s213 = sand.u32 %s48, 1
        %s214 = smul.addr %s213, 128
        %s215 = scalar_lea.vmem [#allocation5], %s214
        %p216 = pneg %p61
        %p217 = pneg %p58
        %s218 = sand.u32 %s19, 1
        %s219 = scalar_lea.sflag [#allocation6], %s218
        %s220 = sand.u32 %s74, 1
        %s221 = scalar_lea.vmem [#allocation7], %s220
        %p222 = pneg %p87
        %p223 = pneg %p84
        %p224 = pneg %p108
        %p225 = pneg %p105
        %p226 = scmp.eq.s32.totalorder %s19, 0
        // Predicated region
        $region45: #{tpu_custom_call.1} parent=31 // pred_check
          %p227 = pneg %p226
        $region46: #{tpu_custom_call.1} parent=31 // pred_check_branch
          %229 = sbr.rel (%p227) target = $region48
        $region47: #{tpu_custom_call.1} parent=31 // pred_region
          %v230 = vld [vmem:[#allocation2] sm:$0xff]
          %231 = vst [vmem:[#allocation8] sm:$0xff] %v230
        $region48: #{tpu_custom_call.1} parent=31 // pred_fallthru
          _
        %v232 = vld [vmem:[#allocation8] sm:$0xff]
        %v233 = vld [vmem:[%s194] sm:$0xff]
        %v234 = vld [vmem:[%s194 + $0x8] sm:$0xff]
        %v235 = vld [vmem:[%s194 + $0x10] sm:$0xff]
        %v236 = vld [vmem:[%s194 + $0x18] sm:$0xff]
        %v237 = vld [vmem:[%s194 + $0x20] sm:$0xff]
        %v238 = vld [vmem:[%s194 + $0x28] sm:$0xff]
        %v239 = vld [vmem:[%s194 + $0x30] sm:$0xff]
        %v240 = vld [vmem:[%s194 + $0x38] sm:$0xff]
        %v241 = vld [vmem:[%s194 + $0x40] sm:$0xff]
        %v242 = vld [vmem:[%s194 + $0x48] sm:$0xff]
        %v243 = vld [vmem:[%s194 + $0x50] sm:$0xff]
        %v244 = vld [vmem:[%s194 + $0x58] sm:$0xff]
        %v245 = vld [vmem:[%s194 + $0x60] sm:$0xff]
        %v246 = vld [vmem:[%s194 + $0x68] sm:$0xff]
        %v247 = vld [vmem:[%s194 + $0x70] sm:$0xff]
        %v248 = vld [vmem:[%s194 + $0x78] sm:$0xff]
        %v249 = vld [vmem:[%s203] sm:$0x1]
        %v251 = vperm.slane %v249, 0
        %253 = vmatpush.msra.mxu0 %v248
        %254 = vmatpush.msra.mxu0 %v247
        %255 = vmatpush.msra.mxu0 %v246
        %256 = vmatpush.msra.mxu0 %v245
        %257 = vmatpush.msra.mxu0 %v244
        %258 = vmatpush.msra.mxu0 %v243
        %259 = vmatpush.msra.mxu0 %v242
        %260 = vmatpush.msra.mxu0 %v241
        %261 = vmatpush.msra.mxu0 %v240
        %262 = vmatpush.msra.mxu0 %v239
        %263 = vmatpush.msra.mxu0 %v238
        %264 = vmatpush.msra.mxu0 %v237
        %265 = vmatpush.msra.mxu0 %v236
        %266 = vmatpush.msra.mxu0 %v235
        %267 = vmatpush.msra.mxu0 %v234
        %268 = vmatpush.msra.mxu0 %v233
        %269 = vmatmul.f32.gmra.mxu0 %v232
        %v270 = vpop.f32.mrf.mxu0
        %v271 = vadd.f32 %v251, %v270
        %272 = vdwg.mxu0
        %273 = vst [vmem:[#allocation8] sm:$0xff] %v271
        // Predicated region
        $region49: #{tpu_custom_call.1} parent=31 // pred_check
          %p274 = pneg %p105
        $region50: #{tpu_custom_call.1} parent=31 // pred_check_branch
          %276 = sbr.rel (%p274) target = $region52
        $region51: #{tpu_custom_call.1} parent=31 // pred_region
          %278 = vsyncadd [#allocation4], 0
          %s280 = sshll.u32 [#allocation8], 4
          %s281 = int_to_ptr.vmem [resolvable:$true] %s280
          %s282 = sshll.u32 %s3, 4
          %s283 = int_to_ptr.hbm [resolvable:$true] %s282
          %285 = dma.vmem_to_hbm [thread:$0]  %s281, 128, %s283, [#allocation4]
        $region52: #{tpu_custom_call.1} parent=31 // pred_fallthru
          _
        // Predicated region
        $region53: #{tpu_custom_call.1} parent=31 // pred_check
          %p286 = pneg %p105
        $region54: #{tpu_custom_call.1} parent=31 // pred_check_branch
          %288 = sbr.rel (%p286) target = $region56
        $region55: #{tpu_custom_call.1} parent=31 // pred_region
          %290 = dma.done [#allocation4], 128
        $region56: #{tpu_custom_call.1} parent=31 // pred_fallthru
          _
      $region32: #{tpu_custom_call.1} parent=5 // pred_fallthru
        _
      %p291 = scmp.le.s32.totalorder 2, %s14
      // Predicated region
      $region57: #{tpu_custom_call.1} parent=5 // pred_check
        %p292 = pneg %p291
      $region58: #{tpu_custom_call.1} parent=5 // pred_check_branch
        %294 = sbr.rel (%p292) target = $region60
      $region59: #{tpu_custom_call.1} parent=5 // pred_region
        %s295 = ssub.s32 %s14, 2
      $region60: #{tpu_custom_call.1} parent=5 // pred_fallthru
        _
    $region6: #{tpu_custom_call.1} parent=1 // loop_footer
      %s18 = sadd.s32 1, %s14
    $region7: #{tpu_custom_call.1} parent=1 // loop_footer_branch
      %13 = sbr.rel target = $region3
    $region8: #{tpu_custom_call.1} parent=1 // loop_exit
      _
    %296 = vsyncpa [#allocation3], 1
    %s297 = scalar_lea.sflag [#allocation3], 1
    %298 = vsyncpa %s297, 1
    %299 = vsyncpa [#allocation6], 1
    %s300 = scalar_lea.sflag [#allocation6], 1
    %301 = vsyncpa %s300, 1
    %302 = vsyncpa [#allocation4], 1
    %s303 = scalar_lea.sflag [#allocation4], 1
    %304 = vsyncpa %s303, 1

</llo_original>
